<compile_context>
chip_gen: v7x
topology: tpu7x:2x2x1
jax: 0.10.0
libtpu: 0.0.40
codegen_flags: <defaults>
</compile_context>

<pallas_src>
import functools

import jax
import jax.numpy as jnp
from jax import lax
from jax.experimental import pallas as pl
from jax.experimental.pallas import tpu as pltpu


def _cdiv(a, b):
    return (a + b - 1) // b


def _round_up(n, m):
    return ((n + m - 1) // m) * m


def _pick_tile(batch128, block_rows):
    """Pick the batch-tile row count (multiple of 128).

    Single tile for small batches; otherwise a multiple of 1024 chosen so the
    grid has an even number of steps (balanced v7x megacore split).  On 1-TC
    chips (v5e/v6e) this costs at most one extra grid step.
    """
    if batch128 < 2048:
        return batch128                       # single (possibly ragged) tile
    n = max(2, _cdiv(batch128, block_rows))
    if n % 2:
        n += 1
    tb = _round_up(_cdiv(batch128, n), 1024)
    while _cdiv(batch128, tb) % 2 and tb > 1024:
        tb -= 1024                            # nudge until the step count is even
    return tb


def _flc_kernel(x_ref, w1_ref, b1_ref, w2_ref, b2_ref, w3_ref, b3_ref, o_ref,
                *, lane_dense_out: bool):
    # One batch tile of tb rows; three matmul + bias + ReLU stages (MXU + VPU).
    x = x_ref[...]

    h = jnp.dot(x, w1_ref[...], preferred_element_type=jnp.float32) + b1_ref[...]
    h = jnp.maximum(h, 0.0)

    h = jnp.dot(h, w2_ref[...], preferred_element_type=jnp.float32) + b2_ref[...]
    h = jnp.maximum(h, 0.0)

    if lane_dense_out:
        # out_features == 1: w3_ref is (1, h2), b3_ref is (1, 1).
        # Head as (1, h2) . (tb, h2)^T -> (1, tb): the batch stays on the lane
        # axis, so the output block is a fully lane-dense row stored in one
        # assignment (no per-row loop, no masked partial-lane stores to HBM).
        y = lax.dot_general(w3_ref[...], h, (((1,), (1,)), ((), ())),
                            preferred_element_type=jnp.float32)   # (1, tb)
        # ReLU on the head matches the PyTorch module (F.relu(fc3(x))).
        o_ref[...] = jnp.maximum(y + b3_ref[...], 0.0).astype(o_ref.dtype)
    else:
        y = jnp.dot(h, w3_ref[...], preferred_element_type=jnp.float32) + b3_ref[...]
        o_ref[...] = jnp.maximum(y, 0.0).astype(o_ref.dtype)


def flc_forward(x, w1, b1, w2, b2, w3, b3, *, block_rows=8192):
    """Pallas FLC.forward for the h1-and-h2-both-set configuration.

    Weights/biases use PyTorch nn.Linear shapes: w* is (out, in), b* is (out,).
    """
    batch, feat = x.shape
    h1_dim = w1.shape[0]
    h2_dim = w2.shape[0]
    out_dim = w3.shape[0]
    lane_dense = out_dim == 1

    batch128 = _round_up(max(batch, 1), 128)
    block_rows = max(1024, _round_up(block_rows, 1024))
    tb = _pick_tile(batch128, block_rows)
    num_tiles = _cdiv(batch128, tb)

    # MXU-friendly [in, out] layout for the first two layers (tiny transposes).
    w1t = w1.T
    b1r = b1.reshape(1, h1_dim)
    w2t = w2.T
    b2r = b2.reshape(1, h2_dim)
    if lane_dense:
        w3k = w3.reshape(1, h2_dim)                 # (1, h2), used as matmul lhs
        b3k = b3.reshape(1, 1)
        # One lane-dense row per 128 batch rows is not needed anymore: the
        # whole output is a single (1, batch128) row; column c = batch row c.
        out_shape = jax.ShapeDtypeStruct((1, batch128), x.dtype)
        out_spec = pl.BlockSpec((1, tb), lambda i: (0, i))
    else:
        w3k = w3.T                                  # (h2, out)
        b3k = b3.reshape(1, out_dim)
        out_shape = jax.ShapeDtypeStruct((batch, out_dim), x.dtype)
        out_spec = pl.BlockSpec((tb, out_dim), lambda i: (i, 0))

    resident = lambda a: pl.BlockSpec(a.shape, lambda i: (0, 0))

    y = pl.pallas_call(
        functools.partial(_flc_kernel, lane_dense_out=lane_dense),
        out_shape=out_shape,
        grid=(num_tiles,),
        in_specs=[
            pl.BlockSpec((tb, feat), lambda i: (i, 0)),   # x: batch-tiled, ragged OK
            resident(w1t), resident(b1r),
            resident(w2t), resident(b2r),
            resident(w3k), resident(b3k),
        ],
        out_specs=out_spec,
        compiler_params=pltpu.CompilerParams(
            dimension_semantics=("parallel",)),           # v7x megacore split
    )(x, w1t, b1r, w2t, b2r, w3k, b3k)

    if lane_dense:
        return y[0, :batch].reshape(batch, 1)
    return y


def _init_linear(key, fan_in, fan_out, dtype=jnp.float32):
    # PyTorch-style init: U(-1/sqrt(fan_in), 1/sqrt(fan_in)); PyTorch shapes.
    kw, kb = jax.random.split(key)
    bound = 1.0 / jnp.sqrt(jnp.asarray(fan_in, dtype))
    w = jax.random.uniform(kw, (fan_out, fan_in), dtype, -bound, bound)
    b = jax.random.uniform(kb, (fan_out,), dtype, -bound, bound)
    return w, b


def _reference(x, w1, b1, w2, b2, w3, b3):
    h = jnp.maximum(x @ w1.T + b1, 0.0)
    h = jnp.maximum(h @ w2.T + b2, 0.0)
    return jnp.maximum(h @ w3.T + b3, 0.0)


if __name__ == "__main__":
    # FLC(train_feat=32, h1=32, h2=16, out=1, doub=False)
    train_feat, h1, h2, out = 32, 32, 16, 1

    key = jax.random.PRNGKey(0)
    kx, kx2, k1, k2, k3 = jax.random.split(key, 5)

    w1, b1 = _init_linear(k1, train_feat, h1)
    w2, b2 = _init_linear(k2, h1, h2)
    w3, b3 = _init_linear(k3, h2, out)

    # Small case: single ragged tile (batch < 128), lane-dense output path.
    x_small = jax.random.normal(kx, (8, train_feat), jnp.float32)
    y_small = jax.block_until_ready(flc_forward(x_small, w1, b1, w2, b2, w3, b3))
    assert y_small.shape == (8, out)
    assert jnp.allclose(y_small, _reference(x_small, w1, b1, w2, b2, w3, b3),
                        atol=1e-5, rtol=1e-4)

    # Larger, non-multiple-of-tile batch: exercises the multi-tile pipelined
    # grid (even step count), ragged tail tile without any jnp.pad copy,
    # resident weights and the lane-dense row output.
    x_big = jax.random.normal(kx2, (3000, train_feat), jnp.float32)
    y_big = jax.block_until_ready(flc_forward(x_big, w1, b1, w2, b2, w3, b3))
    assert y_big.shape == (3000, out)
    assert jnp.allclose(y_big, _reference(x_big, w1, b1, w2, b2, w3, b3),
                        atol=1e-5, rtol=1e-4)

    print("KERNEL_OK")
</pallas_src>

<mosaic_0001>
module attributes {stable_mosaic.version = 11 : i64} {
  func.func @_flc_kernel(%arg0: i32, %arg1: memref<128x32xf32, #tpu.memory_space<vmem>>, %arg2: memref<32x32xf32, #tpu.memory_space<vmem>>, %arg3: memref<1x32xf32, #tpu.memory_space<vmem>>, %arg4: memref<32x16xf32, #tpu.memory_space<vmem>>, %arg5: memref<1x16xf32, #tpu.memory_space<vmem>>, %arg6: memref<1x16xf32, #tpu.memory_space<vmem>>, %arg7: memref<1x1xf32, #tpu.memory_space<vmem>>, %arg8: memref<1x128xf32, #tpu.memory_space<vmem>>) attributes {dimension_semantics = [#tpu.dimension_semantics<parallel>], iteration_bounds = array<i64: 1>, scalar_prefetch = 0 : i64, scratch_operands = 0 : i64, tpu.core_type = #tpu.core_type<tc>, window_params = [{transform_indices = @transform_0, window_bounds = array<i64: 128, 32>}, {pipeline_mode = #tpu.pipeline_mode<synchronous>, transform_indices = @transform_1, window_bounds = array<i64: 32, 32>}, {pipeline_mode = #tpu.pipeline_mode<synchronous>, transform_indices = @transform_2, window_bounds = array<i64: 1, 32>}, {pipeline_mode = #tpu.pipeline_mode<synchronous>, transform_indices = @transform_3, window_bounds = array<i64: 32, 16>}, {pipeline_mode = #tpu.pipeline_mode<synchronous>, transform_indices = @transform_4, window_bounds = array<i64: 1, 16>}, {pipeline_mode = #tpu.pipeline_mode<synchronous>, transform_indices = @transform_5, window_bounds = array<i64: 1, 16>}, {pipeline_mode = #tpu.pipeline_mode<synchronous>, transform_indices = @transform_6, window_bounds = array<i64: 1, 1>}, {transform_indices = @transform_7, window_bounds = array<i64: 1, 128>}]} {
    %c0 = arith.constant 0 : index
    %c0_0 = arith.constant 0 : index
    %0 = vector.load %arg1[%c0, %c0_0] : memref<128x32xf32, #tpu.memory_space<vmem>>, vector<128x32xf32>
    %c0_1 = arith.constant 0 : index
    %c0_2 = arith.constant 0 : index
    %1 = vector.load %arg2[%c0_1, %c0_2] : memref<32x32xf32, #tpu.memory_space<vmem>>, vector<32x32xf32>
    %cst = arith.constant dense<0.000000e+00> : vector<128x32xf32>
    %2 = tpu.matmul %0, %1, %cst {dimension_numbers = #tpu.dot_dimension_numbers<[1], [0], [0], [1], [0, 0, 1, 1], [], []>} : vector<128x32xf32>, vector<32x32xf32>, vector<128x32xf32> -> vector<128x32xf32>
    %c0_3 = arith.constant 0 : index
    %c0_4 = arith.constant 0 : index
    %3 = vector.load %arg3[%c0_3, %c0_4] : memref<1x32xf32, #tpu.memory_space<vmem>>, vector<1x32xf32>
    %4 = vector.broadcast %3 : vector<1x32xf32> to vector<128x32xf32>
    %5 = arith.addf %2, %4 : vector<128x32xf32>
    %cst_5 = arith.constant 0.000000e+00 : f32
    %6 = vector.broadcast %cst_5 : f32 to vector<128x32xf32>
    %7 = arith.maximumf %5, %6 : vector<128x32xf32>
    %c0_6 = arith.constant 0 : index
    %c0_7 = arith.constant 0 : index
    %8 = vector.load %arg4[%c0_6, %c0_7] : memref<32x16xf32, #tpu.memory_space<vmem>>, vector<32x16xf32>
    %cst_8 = arith.constant dense<0.000000e+00> : vector<128x16xf32>
    %9 = tpu.matmul %7, %8, %cst_8 {dimension_numbers = #tpu.dot_dimension_numbers<[1], [0], [0], [1], [0, 0, 1, 1], [], []>} : vector<128x32xf32>, vector<32x16xf32>, vector<128x16xf32> -> vector<128x16xf32>
    %c0_9 = arith.constant 0 : index
    %c0_10 = arith.constant 0 : index
    %10 = vector.load %arg5[%c0_9, %c0_10] : memref<1x16xf32, #tpu.memory_space<vmem>>, vector<1x16xf32>
    %11 = vector.broadcast %10 : vector<1x16xf32> to vector<128x16xf32>
    %12 = arith.addf %9, %11 : vector<128x16xf32>
    %cst_11 = arith.constant 0.000000e+00 : f32
    %13 = vector.broadcast %cst_11 : f32 to vector<128x16xf32>
    %14 = arith.maximumf %12, %13 : vector<128x16xf32>
    %c0_12 = arith.constant 0 : index
    %c0_13 = arith.constant 0 : index
    %15 = vector.load %arg6[%c0_12, %c0_13] : memref<1x16xf32, #tpu.memory_space<vmem>>, vector<1x16xf32>
    %cst_14 = arith.constant dense<0.000000e+00> : vector<1x128xf32>
    %16 = tpu.matmul %15, %14, %cst_14 {dimension_numbers = #tpu.dot_dimension_numbers<[1], [1], [0], [0], [0, 0, 1, 0], [], []>} : vector<1x16xf32>, vector<128x16xf32>, vector<1x128xf32> -> vector<1x128xf32>
    %c0_15 = arith.constant 0 : index
    %c0_16 = arith.constant 0 : index
    %17 = vector.load %arg7[%c0_15, %c0_16] : memref<1x1xf32, #tpu.memory_space<vmem>>, vector<1x1xf32>
    %18 = vector.broadcast %17 : vector<1x1xf32> to vector<1x128xf32>
    %19 = arith.addf %16, %18 : vector<1x128xf32>
    %cst_17 = arith.constant 0.000000e+00 : f32
    %20 = vector.broadcast %cst_17 : f32 to vector<1x128xf32>
    %21 = arith.maximumf %19, %20 : vector<1x128xf32>
    %c0_18 = arith.constant 0 : index
    %c0_19 = arith.constant 0 : index
    %22 = vector.load %arg8[%c0_18, %c0_19] : memref<1x128xf32, #tpu.memory_space<vmem>>, vector<1x128xf32>
    tpu.vector_store %arg8[%c0_18, %c0_19], %21 {strides = array<i32>} : memref<1x128xf32, #tpu.memory_space<vmem>>, vector<1x128xf32>,
    return
  }
  func.func @transform_0(%arg0: i32) -> (i32, i32) {
    %c0_i32 = arith.constant 0 : i32
    %c0_i32_0 = arith.constant 0 : i32
    return %arg0, %c0_i32 : i32, i32
  }
  func.func @transform_1(%arg0: i32) -> (i32, i32) {
    %c0_i32 = arith.constant 0 : i32
    %c0_i32_0 = arith.constant 0 : i32
    %c0_i32_1 = arith.constant 0 : i32
    return %c0_i32, %c0_i32_0 : i32, i32
  }
  func.func @transform_2(%arg0: i32) -> (i32, i32) {
    %c0_i32 = arith.constant 0 : i32
    %c0_i32_0 = arith.constant 0 : i32
    %c0_i32_1 = arith.constant 0 : i32
    return %c0_i32, %c0_i32_0 : i32, i32
  }
  func.func @transform_3(%arg0: i32) -> (i32, i32) {
    %c0_i32 = arith.constant 0 : i32
    %c0_i32_0 = arith.constant 0 : i32
    %c0_i32_1 = arith.constant 0 : i32
    return %c0_i32, %c0_i32_0 : i32, i32
  }
  func.func @transform_4(%arg0: i32) -> (i32, i32) {
    %c0_i32 = arith.constant 0 : i32
    %c0_i32_0 = arith.constant 0 : i32
    %c0_i32_1 = arith.constant 0 : i32
    return %c0_i32, %c0_i32_0 : i32, i32
  }
  func.func @transform_5(%arg0: i32) -> (i32, i32) {
    %c0_i32 = arith.constant 0 : i32
    %c0_i32_0 = arith.constant 0 : i32
    %c0_i32_1 = arith.constant 0 : i32
    return %c0_i32, %c0_i32_0 : i32, i32
  }
  func.func @transform_6(%arg0: i32) -> (i32, i32) {
    %c0_i32 = arith.constant 0 : i32
    %c0_i32_0 = arith.constant 0 : i32
    %c0_i32_1 = arith.constant 0 : i32
    return %c0_i32, %c0_i32_0 : i32, i32
  }
  func.func @transform_7(%arg0: i32) -> (i32, i32) {
    %c0_i32 = arith.constant 0 : i32
    %c0_i32_0 = arith.constant 0 : i32
    return %c0_i32, %arg0 : i32, i32
  }
}

</mosaic_0001>

<llo_original>
// kernel: tpu_custom_call.1
$region0: #{tpu_custom_call.1}
  #allocation0 [shape = 'u32[]', space=smem, size = 0x4, offset = 0x4, fixed_abs, tag = 'smem constant byte address 0x4 - core index']
  #allocation1 [shape = 'u32[144,128]{1,0:T(1,128)}', space=vmem, size = 0x12000, scoped, tag = 'internal scratch']
  #allocation2 [shape = 'f32[1,1]{1,0:T(1,128)S(1)}', space=vmem, size = 0x200, scoped, tag = 'scoped memory for tpu_custom_call.1']
  %s0 = inlined_call_operand.vmem [shape: f32[8,32], index: 0, kind: input, shape index: {}]
  %s1 = inlined_call_operand.vmem [shape: f32[32,32], index: 1, kind: input, shape index: {}]
  %s2 = inlined_call_operand.vmem [shape: f32[1,32], index: 2, kind: input, shape index: {}]
  %s3 = inlined_call_operand.vmem [shape: f32[32,16], index: 3, kind: input, shape index: {}]
  %s4 = inlined_call_operand.vmem [shape: f32[1,16], index: 4, kind: input, shape index: {}]
  %s5 = inlined_call_operand.vmem [shape: f32[1,16], index: 5, kind: input, shape index: {}]
  %s6 = inlined_call_operand.<no memory space> [shape: f32[1,1], index: 6, kind: input, shape index: {}]
  %s7 = inlined_call_operand.hbm [shape: f32[1,128], index: 7, kind: output, shape index: {}]
  %s8 = sld [smem:[#allocation0]]
  $region38: #{tpu_custom_call.1} parent=0
    _
  %s10 = ssub.s32 1, %s8
  %s11 = scalar_select 0, %s10, %s8
  %v12 = vstv %s6
  %13 = vst [vmem:[#allocation2] sm:$0x1] %v12
  $region1: #{tpu_custom_call.1} parent=0
    #allocation3 [shape = 'u8[512]{0}', space=vmem, size = 0x400, scoped, tag = 'output window, operand 0, single buffered']
    #allocation4 [shape = 's32[1]{0}', space=sflag, size = 0x4, scoped, tag = 'scoped memory for tpu_custom_call.1']
    %14 = vsyncpa [#allocation4], 0
    // Predicated region
    $region2: #{tpu_custom_call.1} parent=1 // pred_check
      _
    $region3: #{tpu_custom_call.1} parent=1 // pred_check_branch
      %16 = sbr.rel (0) target = $region5
    $region4: #{tpu_custom_call.1} parent=1 // pred_region
      _
    $region5: #{tpu_custom_call.1} parent=1 // pred_fallthru
      _
    // Predicated region
    $region6: #{tpu_custom_call.1} parent=1 // pred_check
      _
    $region7: #{tpu_custom_call.1} parent=1 // pred_check_branch
      %18 = sbr.rel (0) target = $region9
    $region8: #{tpu_custom_call.1} parent=1 // pred_region
      _
    $region9: #{tpu_custom_call.1} parent=1 // pred_fallthru
      _
    // Predicated region
    $region10: #{tpu_custom_call.1} parent=1 // pred_check
      _
    $region11: #{tpu_custom_call.1} parent=1 // pred_check_branch
      %20 = sbr.rel (0) target = $region13
    $region12: #{tpu_custom_call.1} parent=1 // pred_region
      _
    $region13: #{tpu_custom_call.1} parent=1 // pred_fallthru
      _
    // Predicated region
    $region14: #{tpu_custom_call.1} parent=1 // pred_check
      _
    $region15: #{tpu_custom_call.1} parent=1 // pred_check_branch
      %22 = sbr.rel (0) target = $region17
    $region16: #{tpu_custom_call.1} parent=1 // pred_region
      _
    $region17: #{tpu_custom_call.1} parent=1 // pred_fallthru
      _
    // Predicated region
    $region18: #{tpu_custom_call.1} parent=1 // pred_check
      _
    $region19: #{tpu_custom_call.1} parent=1 // pred_check_branch
      %24 = sbr.rel (0) target = $region21
    $region20: #{tpu_custom_call.1} parent=1 // pred_region
      _
    $region21: #{tpu_custom_call.1} parent=1 // pred_fallthru
      _
    // Predicated region
    $region22: #{tpu_custom_call.1} parent=1 // pred_check
      _
    $region23: #{tpu_custom_call.1} parent=1 // pred_check_branch
      %26 = sbr.rel (0) target = $region25
    $region24: #{tpu_custom_call.1} parent=1 // pred_region
      _
    $region25: #{tpu_custom_call.1} parent=1 // pred_fallthru
      _
    // Predicated region
    $region26: #{tpu_custom_call.1} parent=1 // pred_check
      _
    $region27: #{tpu_custom_call.1} parent=1 // pred_check_branch
      %28 = sbr.rel (0) target = $region29
    $region28: #{tpu_custom_call.1} parent=1 // pred_region
      _
    $region29: #{tpu_custom_call.1} parent=1 // pred_fallthru
      _
    %v29 = vld [vmem:[%s0] sm:$0xff]
    %v30 = vld [vmem:[%s0 + $0x8] sm:$0xff]
    %v31 = vld [vmem:[%s0 + $0x10] sm:$0xff]
    %v32 = vld [vmem:[%s0 + $0x18] sm:$0xff]
    %v33 = vld [vmem:[%s0 + $0x20] sm:$0xff]
    %v34 = vld [vmem:[%s0 + $0x28] sm:$0xff]
    %v35 = vld [vmem:[%s0 + $0x30] sm:$0xff]
    %v36 = vld [vmem:[%s0 + $0x38] sm:$0xff]
    %v37 = vld [vmem:[%s0 + $0x40] sm:$0xff]
    %v38 = vld [vmem:[%s0 + $0x48] sm:$0xff]
    %v39 = vld [vmem:[%s0 + $0x50] sm:$0xff]
    %v40 = vld [vmem:[%s0 + $0x58] sm:$0xff]
    %v41 = vld [vmem:[%s0 + $0x60] sm:$0xff]
    %v42 = vld [vmem:[%s0 + $0x68] sm:$0xff]
    %v43 = vld [vmem:[%s0 + $0x70] sm:$0xff]
    %v44 = vld [vmem:[%s0 + $0x78] sm:$0xff]
    %v45 = vld [vmem:[%s1] sm:$0xff]
    %v46 = vld [vmem:[%s1 + $0x8] sm:$0xff]
    %v47 = vld [vmem:[%s1 + $0x10] sm:$0xff]
    %v48 = vld [vmem:[%s1 + $0x18] sm:$0xff]
    %v49 = vld [vmem:[%s2] sm:$0x1]
    %v51 = vlaneseq
    %v52 = vshrl.u32 %v51, 7
    %v53 = vsub.s32 0, %v52
    %v54 = vrot.slane %v49, %v53
    %vm56 = vcmask 261120
    %v58 = vsel %vm56, %v29, 0
    %v61 = vsel %vm56, %v30, 0
    %v64 = vsel %vm56, %v31, 0
    %v67 = vsel %vm56, %v32, 0
    %v70 = vsel %vm56, %v33, 0
    %v73 = vsel %vm56, %v34, 0
    %v76 = vsel %vm56, %v35, 0
    %v79 = vsel %vm56, %v36, 0
    %v82 = vsel %vm56, %v37, 0
    %v85 = vsel %vm56, %v38, 0
    %v88 = vsel %vm56, %v39, 0
    %v91 = vsel %vm56, %v40, 0
    %v94 = vsel %vm56, %v41, 0
    %v97 = vsel %vm56, %v42, 0
    %v100 = vsel %vm56, %v43, 0
    %v103 = vsel %vm56, %v44, 0
    %105 = vmatprep.subr.mxu0 0.0
    %106 = vmatpush1.msra.mxu0 %v45
    %107 = vmatprep.subr.mxu0 0.0
    %108 = vmatpush1.msra.mxu0 %v46
    %109 = vmatprep.subr.mxu0 0.0
    %110 = vmatpush1.msra.mxu0 %v47
    %111 = vmatprep.subr.mxu0 0.0
    %112 = vmatpush1.msra.mxu0 %v48
    %113 = vmatprep.subr.mxu0 0.0
    %114 = vmatpush1.msra.mxu0 0.0
    %115 = vmatprep.subr.mxu0 0.0
    %116 = vmatpush1.msra.mxu0 0.0
    %117 = vmatprep.subr.mxu0 0.0
    %118 = vmatpush1.msra.mxu0 0.0
    %119 = vmatprep.subr.mxu0 0.0
    %120 = vmatpush1.msra.mxu0 0.0
    %121 = vmatprep.subr.mxu0 0.0
    %122 = vmatpush1.msra.mxu0 0.0
    %123 = vmatprep.subr.mxu0 0.0
    %124 = vmatpush1.msra.mxu0 0.0
    %125 = vmatprep.subr.mxu0 0.0
    %126 = vmatpush1.msra.mxu0 0.0
    %127 = vmatprep.subr.mxu0 0.0
    %128 = vmatpush1.msra.mxu0 0.0
    %129 = vmatprep.subr.mxu0 0.0
    %130 = vmatpush1.msra.mxu0 0.0
    %131 = vmatprep.subr.mxu0 0.0
    %132 = vmatpush1.msra.mxu0 0.0
    %133 = vmatprep.subr.mxu0 0.0
    %134 = vmatpush1.msra.mxu0 0.0
    %135 = vmatprep.subr.mxu0 0.0
    %136 = vmatpush1.msra.mxu0 0.0
    %137 = vmatprep.subr.mxu0 0.0
    %138 = vmatpush1.msra.mxu0 0.0
    %139 = vmatprep.subr.mxu0 0.0
    %140 = vmatpush1.msra.mxu0 0.0
    %141 = vmatprep.subr.mxu0 0.0
    %142 = vmatpush1.msra.mxu0 0.0
    %143 = vmatprep.subr.mxu0 0.0
    %144 = vmatpush1.msra.mxu0 0.0
    %145 = vmatprep.subr.mxu0 0.0
    %146 = vmatpush1.msra.mxu0 0.0
    %147 = vmatprep.subr.mxu0 0.0
    %148 = vmatpush1.msra.mxu0 0.0
    %149 = vmatprep.subr.mxu0 0.0
    %150 = vmatpush1.msra.mxu0 0.0
    %151 = vmatprep.subr.mxu0 0.0
    %152 = vmatpush1.msra.mxu0 0.0
    %153 = vmatprep.subr.mxu0 0.0
    %154 = vmatpush1.msra.mxu0 0.0
    %155 = vmatprep.subr.mxu0 0.0
    %156 = vmatpush1.msra.mxu0 0.0
    %157 = vmatprep.subr.mxu0 0.0
    %158 = vmatpush1.msra.mxu0 0.0
    %159 = vmatprep.subr.mxu0 0.0
    %160 = vmatpush1.msra.mxu0 0.0
    %161 = vmatprep.subr.mxu0 0.0
    %162 = vmatpush1.msra.mxu0 0.0
    %163 = vmatprep.subr.mxu0 0.0
    %164 = vmatpush1.msra.mxu0 0.0
    %165 = vmatprep.subr.mxu0 0.0
    %166 = vmatpush1.msra.mxu0 0.0
    %167 = vmatprep.subr.mxu0 0.0
    %168 = vmatpush1.msra.mxu0 0.0
    %169 = vmatprep.mubr.f32.mxu0 0.0
    %170 = vmatmul.mubr.f32.gmra.mrb[0].mxu0 %v58
    %v171 = vpop.f32.mrb[0].mxu0
    %v172 = vadd.f32 %v54, %v171
    %v173 = vpop.f32.mrb[0].mxu0
    %174 = vmatprep.mubr.f32.mxu0 0.0
    %175 = vmatmul.mubr.f32.gmra.mrb[0].mxu0 %v61
    %v176 = vpop.f32.mrb[0].mxu0
    %v177 = vadd.f32 %v54, %v176
    %v178 = vpop.f32.mrb[0].mxu0
    %179 = vmatprep.mubr.f32.mxu0 0.0
    %180 = vmatmul.mubr.f32.gmra.mrb[0].mxu0 %v64
    %v181 = vpop.f32.mrb[0].mxu0
    %v182 = vadd.f32 %v54, %v181
    %v183 = vpop.f32.mrb[0].mxu0
    %184 = vmatprep.mubr.f32.mxu0 0.0
    %185 = vmatmul.mubr.f32.gmra.mrb[0].mxu0 %v67
    %v186 = vpop.f32.mrb[0].mxu0
    %v187 = vadd.f32 %v54, %v186
    %v188 = vpop.f32.mrb[0].mxu0
    %189 = vmatprep.mubr.f32.mxu0 0.0
    %190 = vmatmul.mubr.f32.gmra.mrb[0].mxu0 %v70
    %v191 = vpop.f32.mrb[0].mxu0
    %v192 = vadd.f32 %v54, %v191
    %v193 = vpop.f32.mrb[0].mxu0
    %194 = vmatprep.mubr.f32.mxu0 0.0
    %195 = vmatmul.mubr.f32.gmra.mrb[0].mxu0 %v73
    %v196 = vpop.f32.mrb[0].mxu0
    %v197 = vadd.f32 %v54, %v196
    %v198 = vpop.f32.mrb[0].mxu0
    %199 = vmatprep.mubr.f32.mxu0 0.0
    %200 = vmatmul.mubr.f32.gmra.mrb[0].mxu0 %v76
    %v201 = vpop.f32.mrb[0].mxu0
    %v202 = vadd.f32 %v54, %v201
    %v203 = vpop.f32.mrb[0].mxu0
    %204 = vmatprep.mubr.f32.mxu0 0.0
    %205 = vmatmul.mubr.f32.gmra.mrb[0].mxu0 %v79
    %v206 = vpop.f32.mrb[0].mxu0
    %v207 = vadd.f32 %v54, %v206
    %v208 = vpop.f32.mrb[0].mxu0
    %209 = vmatprep.mubr.f32.mxu0 0.0
    %210 = vmatmul.mubr.f32.gmra.mrb[0].mxu0 %v82
    %v211 = vpop.f32.mrb[0].mxu0
    %v212 = vadd.f32 %v54, %v211
    %v213 = vpop.f32.mrb[0].mxu0
    %214 = vmatprep.mubr.f32.mxu0 0.0
    %215 = vmatmul.mubr.f32.gmra.mrb[0].mxu0 %v85
    %v216 = vpop.f32.mrb[0].mxu0
    %v217 = vadd.f32 %v54, %v216
    %v218 = vpop.f32.mrb[0].mxu0
    %219 = vmatprep.mubr.f32.mxu0 0.0
    %220 = vmatmul.mubr.f32.gmra.mrb[0].mxu0 %v88
    %v221 = vpop.f32.mrb[0].mxu0
    %v222 = vadd.f32 %v54, %v221
    %v223 = vpop.f32.mrb[0].mxu0
    %224 = vmatprep.mubr.f32.mxu0 0.0
    %225 = vmatmul.mubr.f32.gmra.mrb[0].mxu0 %v91
    %v226 = vpop.f32.mrb[0].mxu0
    %v227 = vadd.f32 %v54, %v226
    %v228 = vpop.f32.mrb[0].mxu0
    %229 = vmatprep.mubr.f32.mxu0 0.0
    %230 = vmatmul.mubr.f32.gmra.mrb[0].mxu0 %v94
    %v231 = vpop.f32.mrb[0].mxu0
    %v232 = vadd.f32 %v54, %v231
    %v233 = vpop.f32.mrb[0].mxu0
    %234 = vmatprep.mubr.f32.mxu0 0.0
    %235 = vmatmul.mubr.f32.gmra.mrb[0].mxu0 %v97
    %v236 = vpop.f32.mrb[0].mxu0
    %v237 = vadd.f32 %v54, %v236
    %v238 = vpop.f32.mrb[0].mxu0
    %239 = vmatprep.mubr.f32.mxu0 0.0
    %240 = vmatmul.mubr.f32.gmra.mrb[0].mxu0 %v100
    %v241 = vpop.f32.mrb[0].mxu0
    %v242 = vadd.f32 %v54, %v241
    %v243 = vpop.f32.mrb[0].mxu0
    %244 = vmatprep.mubr.f32.mxu0 0.0
    %245 = vmatmul.mubr.f32.gmra.mrb[0].mxu0 %v103
    %v246 = vpop.f32.mrb[0].mxu0
    %v247 = vadd.f32 %v54, %v246
    %v248 = vpop.f32.mrb[0].mxu0
    %249 = vdwg.mxu0
    %v250 = vmax.f32 %v172, 0.0
    %v251 = vmax.f32 %v177, 0.0
    %v252 = vmax.f32 %v182, 0.0
    %v253 = vmax.f32 %v187, 0.0
    %v254 = vmax.f32 %v192, 0.0
    %v255 = vmax.f32 %v197, 0.0
    %v256 = vmax.f32 %v202, 0.0
    %v257 = vmax.f32 %v207, 0.0
    %v258 = vmax.f32 %v212, 0.0
    %v259 = vmax.f32 %v217, 0.0
    %v260 = vmax.f32 %v222, 0.0
    %v261 = vmax.f32 %v227, 0.0
    %v262 = vmax.f32 %v232, 0.0
    %v263 = vmax.f32 %v237, 0.0
    %v264 = vmax.f32 %v242, 0.0
    %v265 = vmax.f32 %v247, 0.0
    %v266 = vld [vmem:[%s3] sm:$0xff]
    %v267 = vld [vmem:[%s3 + $0x8] sm:$0xff]
    %v268 = vld [vmem:[%s3 + $0x10] sm:$0xff]
    %v269 = vld [vmem:[%s3 + $0x18] sm:$0xff]
    %v270 = vld [vmem:[%s4] sm:$0x1]
    %v272 = vlaneseq
    %v273 = vshrl.u32 %v272, 7
    %v274 = vsub.s32 0, %v273
    %v275 = vrot.slane %v270, %v274
    %v278 = vsel %vm56, %v250, 0
    %v281 = vsel %vm56, %v251, 0
    %v284 = vsel %vm56, %v252, 0
    %v287 = vsel %vm56, %v253, 0
    %v290 = vsel %vm56, %v254, 0
    %v293 = vsel %vm56, %v255, 0
    %v296 = vsel %vm56, %v256, 0
    %v299 = vsel %vm56, %v257, 0
    %v302 = vsel %vm56, %v258, 0
    %v305 = vsel %vm56, %v259, 0
    %v308 = vsel %vm56, %v260, 0
    %v311 = vsel %vm56, %v261, 0
    %v314 = vsel %vm56, %v262, 0
    %v317 = vsel %vm56, %v263, 0
    %v320 = vsel %vm56, %v264, 0
    %v323 = vsel %vm56, %v265, 0
    %325 = vmatprep.subr.mxu0 0.0
    %326 = vmatpush1.msra.mxu0 %v266
    %327 = vmatprep.subr.mxu0 0.0
    %328 = vmatpush1.msra.mxu0 %v267
    %329 = vmatprep.subr.mxu0 0.0
    %330 = vmatpush1.msra.mxu0 %v268
    %331 = vmatprep.subr.mxu0 0.0
    %332 = vmatpush1.msra.mxu0 %v269
    %333 = vmatprep.subr.mxu0 0.0
    %334 = vmatpush1.msra.mxu0 0.0
    %335 = vmatprep.subr.mxu0 0.0
    %336 = vmatpush1.msra.mxu0 0.0
    %337 = vmatprep.subr.mxu0 0.0
    %338 = vmatpush1.msra.mxu0 0.0
    %339 = vmatprep.subr.mxu0 0.0
    %340 = vmatpush1.msra.mxu0 0.0
    %341 = vmatprep.subr.mxu0 0.0
    %342 = vmatpush1.msra.mxu0 0.0
    %343 = vmatprep.subr.mxu0 0.0
    %344 = vmatpush1.msra.mxu0 0.0
    %345 = vmatprep.subr.mxu0 0.0
    %346 = vmatpush1.msra.mxu0 0.0
    %347 = vmatprep.subr.mxu0 0.0
    %348 = vmatpush1.msra.mxu0 0.0
    %349 = vmatprep.subr.mxu0 0.0
    %350 = vmatpush1.msra.mxu0 0.0
    %351 = vmatprep.subr.mxu0 0.0
    %352 = vmatpush1.msra.mxu0 0.0
    %353 = vmatprep.subr.mxu0 0.0
    %354 = vmatpush1.msra.mxu0 0.0
    %355 = vmatprep.subr.mxu0 0.0
    %356 = vmatpush1.msra.mxu0 0.0
    %357 = vmatprep.subr.mxu0 0.0
    %358 = vmatpush1.msra.mxu0 0.0
    %359 = vmatprep.subr.mxu0 0.0
    %360 = vmatpush1.msra.mxu0 0.0
    %361 = vmatprep.subr.mxu0 0.0
    %362 = vmatpush1.msra.mxu0 0.0
    %363 = vmatprep.subr.mxu0 0.0
    %364 = vmatpush1.msra.mxu0 0.0
    %365 = vmatprep.subr.mxu0 0.0
    %366 = vmatpush1.msra.mxu0 0.0
    %367 = vmatprep.subr.mxu0 0.0
    %368 = vmatpush1.msra.mxu0 0.0
    %369 = vmatprep.subr.mxu0 0.0
    %370 = vmatpush1.msra.mxu0 0.0
    %371 = vmatprep.subr.mxu0 0.0
    %372 = vmatpush1.msra.mxu0 0.0
    %373 = vmatprep.subr.mxu0 0.0
    %374 = vmatpush1.msra.mxu0 0.0
    %375 = vmatprep.subr.mxu0 0.0
    %376 = vmatpush1.msra.mxu0 0.0
    %377 = vmatprep.subr.mxu0 0.0
    %378 = vmatpush1.msra.mxu0 0.0
    %379 = vmatprep.subr.mxu0 0.0
    %380 = vmatpush1.msra.mxu0 0.0
    %381 = vmatprep.subr.mxu0 0.0
    %382 = vmatpush1.msra.mxu0 0.0
    %383 = vmatprep.subr.mxu0 0.0
    %384 = vmatpush1.msra.mxu0 0.0
    %385 = vmatprep.subr.mxu0 0.0
    %386 = vmatpush1.msra.mxu0 0.0
    %387 = vmatprep.subr.mxu0 0.0
    %388 = vmatpush1.msra.mxu0 0.0
    %389 = vmatprep.mubr.f32.mxu0 0.0
    %390 = vmatmul.mubr.f32.gmra.mrb[0].mxu0 %v278
    %v391 = vpop.f32.mrb[0].mxu0
    %v392 = vadd.f32 %v275, %v391
    %v393 = vpop.f32.mrb[0].mxu0
    %394 = vmatprep.mubr.f32.mxu0 0.0
    %395 = vmatmul.mubr.f32.gmra.mrb[0].mxu0 %v281
    %v396 = vpop.f32.mrb[0].mxu0
    %v397 = vadd.f32 %v275, %v396
    %v398 = vpop.f32.mrb[0].mxu0
    %399 = vmatprep.mubr.f32.mxu0 0.0
    %400 = vmatmul.mubr.f32.gmra.mrb[0].mxu0 %v284
    %v401 = vpop.f32.mrb[0].mxu0
    %v402 = vadd.f32 %v275, %v401
    %v403 = vpop.f32.mrb[0].mxu0
    %404 = vmatprep.mubr.f32.mxu0 0.0
    %405 = vmatmul.mubr.f32.gmra.mrb[0].mxu0 %v287
    %v406 = vpop.f32.mrb[0].mxu0
    %v407 = vadd.f32 %v275, %v406
    %v408 = vpop.f32.mrb[0].mxu0
    %409 = vmatprep.mubr.f32.mxu0 0.0
    %410 = vmatmul.mubr.f32.gmra.mrb[0].mxu0 %v290
    %v411 = vpop.f32.mrb[0].mxu0
    %v412 = vadd.f32 %v275, %v411
    %v413 = vpop.f32.mrb[0].mxu0
    %414 = vmatprep.mubr.f32.mxu0 0.0
    %415 = vmatmul.mubr.f32.gmra.mrb[0].mxu0 %v293
    %v416 = vpop.f32.mrb[0].mxu0
    %v417 = vadd.f32 %v275, %v416
    %v418 = vpop.f32.mrb[0].mxu0
    %419 = vmatprep.mubr.f32.mxu0 0.0
    %420 = vmatmul.mubr.f32.gmra.mrb[0].mxu0 %v296
    %v421 = vpop.f32.mrb[0].mxu0
    %v422 = vadd.f32 %v275, %v421
    %v423 = vpop.f32.mrb[0].mxu0
    %424 = vmatprep.mubr.f32.mxu0 0.0
    %425 = vmatmul.mubr.f32.gmra.mrb[0].mxu0 %v299
    %v426 = vpop.f32.mrb[0].mxu0
    %v427 = vadd.f32 %v275, %v426
    %v428 = vpop.f32.mrb[0].mxu0
    %429 = vmatprep.mubr.f32.mxu0 0.0
    %430 = vmatmul.mubr.f32.gmra.mrb[0].mxu0 %v302
    %v431 = vpop.f32.mrb[0].mxu0
    %v432 = vadd.f32 %v275, %v431
    %v433 = vpop.f32.mrb[0].mxu0
    %434 = vmatprep.mubr.f32.mxu0 0.0
    %435 = vmatmul.mubr.f32.gmra.mrb[0].mxu0 %v305
    %v436 = vpop.f32.mrb[0].mxu0
    %v437 = vadd.f32 %v275, %v436
    %v438 = vpop.f32.mrb[0].mxu0
    %439 = vmatprep.mubr.f32.mxu0 0.0
    %440 = vmatmul.mubr.f32.gmra.mrb[0].mxu0 %v308
    %v441 = vpop.f32.mrb[0].mxu0
    %v442 = vadd.f32 %v275, %v441
    %v443 = vpop.f32.mrb[0].mxu0
    %444 = vmatprep.mubr.f32.mxu0 0.0
    %445 = vmatmul.mubr.f32.gmra.mrb[0].mxu0 %v311
    %v446 = vpop.f32.mrb[0].mxu0
    %v447 = vadd.f32 %v275, %v446
    %v448 = vpop.f32.mrb[0].mxu0
    %449 = vmatprep.mubr.f32.mxu0 0.0
    %450 = vmatmul.mubr.f32.gmra.mrb[0].mxu0 %v314
    %v451 = vpop.f32.mrb[0].mxu0
    %v452 = vadd.f32 %v275, %v451
    %v453 = vpop.f32.mrb[0].mxu0
    %454 = vmatprep.mubr.f32.mxu0 0.0
    %455 = vmatmul.mubr.f32.gmra.mrb[0].mxu0 %v317
    %v456 = vpop.f32.mrb[0].mxu0
    %v457 = vadd.f32 %v275, %v456
    %v458 = vpop.f32.mrb[0].mxu0
    %459 = vmatprep.mubr.f32.mxu0 0.0
    %460 = vmatmul.mubr.f32.gmra.mrb[0].mxu0 %v320
    %v461 = vpop.f32.mrb[0].mxu0
    %v462 = vadd.f32 %v275, %v461
    %v463 = vpop.f32.mrb[0].mxu0
    %464 = vmatprep.mubr.f32.mxu0 0.0
    %465 = vmatmul.mubr.f32.gmra.mrb[0].mxu0 %v323
    %v466 = vpop.f32.mrb[0].mxu0
    %v467 = vadd.f32 %v275, %v466
    %v468 = vpop.f32.mrb[0].mxu0
    %469 = vdwg.mxu0
    %v470 = vmax.f32 %v392, 0.0
    %v471 = vmax.f32 %v397, 0.0
    %v472 = vmax.f32 %v402, 0.0
    %v473 = vmax.f32 %v407, 0.0
    %v474 = vmax.f32 %v412, 0.0
    %v475 = vmax.f32 %v417, 0.0
    %v476 = vmax.f32 %v422, 0.0
    %v477 = vmax.f32 %v427, 0.0
    %v478 = vmax.f32 %v432, 0.0
    %v479 = vmax.f32 %v437, 0.0
    %v480 = vmax.f32 %v442, 0.0
    %v481 = vmax.f32 %v447, 0.0
    %v482 = vmax.f32 %v452, 0.0
    %v483 = vmax.f32 %v457, 0.0
    %v484 = vmax.f32 %v462, 0.0
    %v485 = vmax.f32 %v467, 0.0
    %v486 = vld [vmem:[%s5] sm:$0x1]
    %v487 = vld [vmem:[#allocation2] sm:$0x1]
    %489 = vset.pattern.permute.xlu0 0
    %490 = vperm.xlu0 %489, %v487
    %v491 = vpop.permute.xlu0 %490
    %v493 = vlaneseq
    %v494 = vshrl.u32 %v493, 7
    %v495 = vsub.s32 0, %v494
    %v496 = vrot.slane %v491, %v495
    %vm497 = vcmask 130048
    %v499 = vsel %vm497, %v486, 0
    %v502 = vsel %vm497, %v470, 0
    %v505 = vsel %vm497, %v471, 0
    %v508 = vsel %vm497, %v472, 0
    %v511 = vsel %vm497, %v473, 0
    %v514 = vsel %vm497, %v474, 0
    %v517 = vsel %vm497, %v475, 0
    %v520 = vsel %vm497, %v476, 0
    %v523 = vsel %vm497, %v477, 0
    %v526 = vsel %vm497, %v478, 0
    %v529 = vsel %vm497, %v479, 0
    %v532 = vsel %vm497, %v480, 0
    %v535 = vsel %vm497, %v481, 0
    %v538 = vsel %vm497, %v482, 0
    %v541 = vsel %vm497, %v483, 0
    %v544 = vsel %vm497, %v484, 0
    %v547 = vsel %vm497, %v485, 0
    %549 = vmatprep.subr.mxu0 0.0
    %550 = vmatpush1.xpose.msra.mxu0 %v502
    %551 = vmatprep.subr.mxu0 0.0
    %552 = vmatpush1.xpose.msra.mxu0 %v505
    %553 = vmatprep.subr.mxu0 0.0
    %554 = vmatpush1.xpose.msra.mxu0 %v508
    %555 = vmatprep.subr.mxu0 0.0
    %556 = vmatpush1.xpose.msra.mxu0 %v511
    %557 = vmatprep.subr.mxu0 0.0
    %558 = vmatpush1.xpose.msra.mxu0 %v514
    %559 = vmatprep.subr.mxu0 0.0
    %560 = vmatpush1.xpose.msra.mxu0 %v517
    %561 = vmatprep.subr.mxu0 0.0
    %562 = vmatpush1.xpose.msra.mxu0 %v520
    %563 = vmatprep.subr.mxu0 0.0
    %564 = vmatpush1.xpose.msra.mxu0 %v523
    %565 = vmatprep.subr.mxu0 0.0
    %566 = vmatpush1.xpose.msra.mxu0 %v526
    %567 = vmatprep.subr.mxu0 0.0
    %568 = vmatpush1.xpose.msra.mxu0 %v529
    %569 = vmatprep.subr.mxu0 0.0
    %570 = vmatpush1.xpose.msra.mxu0 %v532
    %571 = vmatprep.subr.mxu0 0.0
    %572 = vmatpush1.xpose.msra.mxu0 %v535
    %573 = vmatprep.subr.mxu0 0.0
    %574 = vmatpush1.xpose.msra.mxu0 %v538
    %575 = vmatprep.subr.mxu0 0.0
    %576 = vmatpush1.xpose.msra.mxu0 %v541
    %577 = vmatprep.subr.mxu0 0.0
    %578 = vmatpush1.xpose.msra.mxu0 %v544
    %579 = vmatprep.subr.mxu0 0.0
    %580 = vmatpush1.xpose.msra.mxu0 %v547
    %581 = vmatprep.subr.mxu0 0.0
    %582 = vmatpush1.xpose.msra.mxu0 0.0
    %583 = vmatprep.subr.mxu0 0.0
    %584 = vmatpush1.xpose.msra.mxu0 0.0
    %585 = vmatprep.subr.mxu0 0.0
    %586 = vmatpush1.xpose.msra.mxu0 0.0
    %587 = vmatprep.subr.mxu0 0.0
    %588 = vmatpush1.xpose.msra.mxu0 0.0
    %589 = vmatprep.subr.mxu0 0.0
    %590 = vmatpush1.xpose.msra.mxu0 0.0
    %591 = vmatprep.subr.mxu0 0.0
    %592 = vmatpush1.xpose.msra.mxu0 0.0
    %593 = vmatprep.subr.mxu0 0.0
    %594 = vmatpush1.xpose.msra.mxu0 0.0
    %595 = vmatprep.subr.mxu0 0.0
    %596 = vmatpush1.xpose.msra.mxu0 0.0
    %597 = vmatprep.subr.mxu0 0.0
    %598 = vmatpush1.xpose.msra.mxu0 0.0
    %599 = vmatprep.subr.mxu0 0.0
    %600 = vmatpush1.xpose.msra.mxu0 0.0
    %601 = vmatprep.subr.mxu0 0.0
    %602 = vmatpush1.xpose.msra.mxu0 0.0
    %603 = vmatprep.subr.mxu0 0.0
    %604 = vmatpush1.xpose.msra.mxu0 0.0
    %605 = vmatprep.subr.mxu0 0.0
    %606 = vmatpush1.xpose.msra.mxu0 0.0
    %607 = vmatprep.subr.mxu0 0.0
    %608 = vmatpush1.xpose.msra.mxu0 0.0
    %609 = vmatprep.subr.mxu0 0.0
    %610 = vmatpush1.xpose.msra.mxu0 0.0
    %611 = vmatprep.subr.mxu0 0.0
    %612 = vmatpush1.xpose.msra.mxu0 0.0
    %613 = vmatprep.mubr.f32.mxu0 0.0
    %614 = vmatmul.mubr.f32.gmra.mrb[0].mxu0 %v499
    %v615 = vpop.f32.mrb[0].mxu0
    %v616 = vadd.f32 %v496, %v615
    %v617 = vpop.f32.mrb[0].mxu0
    %618 = vdwg.mxu0
    %v619 = vmax.f32 %v616, 0.0
    %620 = vst [vmem:[#allocation3] sm:$0x1] %v619
    // Predicated region
    $region30: #{tpu_custom_call.1} parent=1 // pred_check
      _
    $region31: #{tpu_custom_call.1} parent=1 // pred_check_branch
      %622 = sbr.rel (0) target = $region33
    $region32: #{tpu_custom_call.1} parent=1 // pred_region
      %s624 = ssub.s32 16, 16
      %625 = vsyncadd [#allocation4], %s624
      %s627 = sshll.u32 [#allocation3], 4
      %s628 = int_to_ptr.vmem [resolvable:$true] %s627
      %630 = dma.vmem_to_hbm [thread:$0]  %s628, 16, %s7, [#allocation4]
    $region33: #{tpu_custom_call.1} parent=1 // pred_fallthru
      _
    // Predicated region
    $region34: #{tpu_custom_call.1} parent=1 // pred_check
      _
    $region35: #{tpu_custom_call.1} parent=1 // pred_check_branch
      %632 = sbr.rel (0) target = $region37
    $region36: #{tpu_custom_call.1} parent=1 // pred_region
      %633 = dma.done [#allocation4], 16
    $region37: #{tpu_custom_call.1} parent=1 // pred_fallthru
      _
    %634 = vsyncpa [#allocation4], 1

</llo_original>
